<compile_context>
chip_gen: v5e
topology: v5e:2x2
jax: 0.10.0
libtpu: 0.0.40
codegen_flags: <defaults>
</compile_context>

<pallas_src>
import functools
import math

import jax
import jax.numpy as jnp
from jax import lax
from jax.experimental import pallas as pl
from jax.experimental.pallas import tpu as pltpu


# ------------------------------------------------------------ tile picking --
_LANE_CANDIDATES = (512, 256, 128)                        # last dim: x128 or full
_SUBLANE_CANDIDATES = (512, 256, 128, 64, 32, 16, 8)      # 2nd-minor: x8 or full


def _pick_tile(dim, candidates):
    for c in candidates:
        if c <= dim and dim % c == 0:
            return c
    return dim  # full dimension is always a legal block size


# --------------------------------------------------- per-head projection ----
def _head_proj_kernel(x_ref, w_ref, b_ref, o_ref, acc_ref):
    # x: (tm, tk)   w: (1, tk, dt)   b: (1, 1, dt)   o: (1, tm, dt)
    @pl.when(pl.program_id(2) == 0)
    def _():
        acc_ref[...] = jnp.zeros_like(acc_ref)

    acc_ref[...] += jnp.dot(x_ref[...], w_ref[0],
                            preferred_element_type=jnp.float32)

    @pl.when(pl.program_id(2) == pl.num_programs(2) - 1)
    def _():
        o_ref[0] = (acc_ref[...] + b_ref[0]).astype(o_ref.dtype)


def head_projection(x2d, w, b):
    """x2d: [M, Din], w: [H, Din, dt], b: [H, 1, dt]  ->  [H, M, dt]."""
    M, Din = x2d.shape
    H, _, dt = w.shape
    tm = _pick_tile(M, _SUBLANE_CANDIDATES)
    tk = _pick_tile(Din, _LANE_CANDIDATES)
    grid = (H, M // tm, Din // tk)
    return pl.pallas_call(
        _head_proj_kernel,
        out_shape=jax.ShapeDtypeStruct((H, M, dt), x2d.dtype),
        grid_spec=pltpu.PrefetchScalarGridSpec(
            num_scalar_prefetch=0,
            grid=grid,
            in_specs=[
                pl.BlockSpec((tm, tk), lambda h, m, k: (m, k)),
                pl.BlockSpec((1, tk, dt), lambda h, m, k: (h, k, 0)),
                pl.BlockSpec((1, 1, dt), lambda h, m, k: (h, 0, 0)),
            ],
            out_specs=pl.BlockSpec((1, tm, dt), lambda h, m, k: (h, m, 0)),
            scratch_shapes=[pltpu.VMEM((tm, dt), jnp.float32)],
        ),
        compiler_params=pltpu.CompilerParams(
            dimension_semantics=("parallel", "parallel", "arbitrary")),
    )(x2d, w, b)


# ----------------------------------------------- flash-style attention ------
def _flash_attn_kernel(q_ref, k_ref, v_ref, o_ref, m_ref, l_ref, acc_ref, *,
                       scale):
    ki = pl.program_id(3)

    @pl.when(ki == 0)
    def _():
        m_ref[...] = jnp.full(m_ref.shape, -jnp.inf, dtype=m_ref.dtype)
        l_ref[...] = jnp.zeros(l_ref.shape, dtype=l_ref.dtype)
        acc_ref[...] = jnp.zeros(acc_ref.shape, dtype=acc_ref.dtype)

    q = q_ref[0, 0]   # (tq, dt)
    k = k_ref[0, 0]   # (tk, dt)
    v = v_ref[0, 0]   # (tk, dt)

    # Contract the last dims of q and k directly: no explicit k.T (XLU) needed.
    s = lax.dot_general(q, k, (((1,), (1,)), ((), ())),
                        preferred_element_type=jnp.float32) * scale

    m_prev = m_ref[...]
    m_new = jnp.maximum(m_prev, jnp.max(s, axis=-1, keepdims=True))
    alpha = jnp.exp(m_prev - m_new)
    p = jnp.exp(s - m_new)
    l_ref[...] = alpha * l_ref[...] + jnp.sum(p, axis=-1, keepdims=True)
    acc_ref[...] = alpha * acc_ref[...] + jnp.dot(
        p.astype(v.dtype), v, preferred_element_type=jnp.float32)
    m_ref[...] = m_new

    @pl.when(ki == pl.num_programs(3) - 1)
    def _():
        inv_l = pl.reciprocal(l_ref[...], approx=True)   # EUP slot (~free)
        o_ref[0, 0] = (acc_ref[...] * inv_l).astype(o_ref.dtype)


def flash_attention(qh, kh, vh):
    """qh/kh/vh: [H, B, L, dt]  ->  [H, B, L, dt]."""
    H, B, L, dt = qh.shape
    tq = _pick_tile(L, _SUBLANE_CANDIDATES)
    tk = _pick_tile(L, _SUBLANE_CANDIDATES)
    grid = (H, B, L // tq, L // tk)
    scale = 1.0 / math.sqrt(dt)
    return pl.pallas_call(
        functools.partial(_flash_attn_kernel, scale=scale),
        out_shape=jax.ShapeDtypeStruct((H, B, L, dt), qh.dtype),
        grid_spec=pltpu.PrefetchScalarGridSpec(
            num_scalar_prefetch=0,
            grid=grid,
            in_specs=[
                pl.BlockSpec((1, 1, tq, dt), lambda h, b, qi, ki: (h, b, qi, 0)),
                pl.BlockSpec((1, 1, tk, dt), lambda h, b, qi, ki: (h, b, ki, 0)),
                pl.BlockSpec((1, 1, tk, dt), lambda h, b, qi, ki: (h, b, ki, 0)),
            ],
            out_specs=pl.BlockSpec((1, 1, tq, dt),
                                   lambda h, b, qi, ki: (h, b, qi, 0)),
            scratch_shapes=[
                pltpu.VMEM((tq, 1), jnp.float32),    # running max m
                pltpu.VMEM((tq, 1), jnp.float32),    # running sum l
                pltpu.VMEM((tq, dt), jnp.float32),   # output accumulator
            ],
        ),
        compiler_params=pltpu.CompilerParams(
            dimension_semantics=("parallel", "parallel", "parallel",
                                 "arbitrary")),
    )(qh, kh, vh)


# -------------------------------- output projection (concat folded in) ------
def _out_proj_kernel(a_ref, w_ref, b_ref, o_ref, acc_ref):
    # a: (1, tm, dt)   w: (1, dt, tn)   b: (1, tn)   o: (tm, tn)
    h = pl.program_id(2)

    @pl.when(h == 0)
    def _():
        acc_ref[...] = jnp.zeros_like(acc_ref)

    acc_ref[...] += jnp.dot(a_ref[0], w_ref[0],
                            preferred_element_type=jnp.float32)

    @pl.when(h == pl.num_programs(2) - 1)
    def _():
        o_ref[...] = (acc_ref[...] + b_ref[...]).astype(o_ref.dtype)


def output_projection(a, w, b):
    """a: [H, M, dt], w: [H, dt, D], b: [1, D]  ->  [M, D] (== concat @ WcT)."""
    H, M, dt = a.shape
    D = w.shape[2]
    tm = _pick_tile(M, _SUBLANE_CANDIDATES)
    tn = _pick_tile(D, _LANE_CANDIDATES)
    grid = (M // tm, D // tn, H)
    return pl.pallas_call(
        _out_proj_kernel,
        out_shape=jax.ShapeDtypeStruct((M, D), a.dtype),
        grid_spec=pltpu.PrefetchScalarGridSpec(
            num_scalar_prefetch=0,
            grid=grid,
            in_specs=[
                pl.BlockSpec((1, tm, dt), lambda m, n, h: (h, m, 0)),
                pl.BlockSpec((1, dt, tn), lambda m, n, h: (h, 0, n)),
                pl.BlockSpec((1, tn), lambda m, n, h: (0, n)),
            ],
            out_specs=pl.BlockSpec((tm, tn), lambda m, n, h: (m, n)),
            scratch_shapes=[pltpu.VMEM((tm, tn), jnp.float32)],
        ),
        compiler_params=pltpu.CompilerParams(
            dimension_semantics=("parallel", "parallel", "arbitrary")),
    )(a, w, b)


# -------------------------------------------------------------- full MHA ----
def prepare_params(params, n_head):
    """One-time host-side layout plumbing: pre-transpose + head-split weights."""
    D = params["wq"].shape[0]
    dt = D // n_head

    def head_split_w(w):   # torch [Dout, Din] -> [H, Din, dt]  (y = x @ w.T)
        return jnp.transpose(w.T.reshape(D, n_head, dt), (1, 0, 2))

    def head_split_b(b):   # [Dout] -> [H, 1, dt]
        return b.reshape(n_head, 1, dt)

    return dict(
        wq=head_split_w(params["wq"]), bq=head_split_b(params["bq"]),
        wk=head_split_w(params["wk"]), bk=head_split_b(params["bk"]),
        wv=head_split_w(params["wv"]), bv=head_split_b(params["bv"]),
        # concat + w_concat folded into a head-reduction GEMM:
        wc=params["wc"].T.reshape(n_head, dt, D),
        bc=params["bc"].reshape(1, D),
    )


def multi_head_attention(q, k, v, params, n_head):
    B, L, D = q.shape
    dt = D // n_head
    M = B * L
    pp = prepare_params(params, n_head)

    # Q/K/V kept as separate projections (module allows q != k != v); each
    # kernel emits the per-head layout directly (no split() HBM round-trip).
    qh = head_projection(q.reshape(M, D), pp["wq"], pp["bq"])   # [H, M, dt]
    kh = head_projection(k.reshape(M, D), pp["wk"], pp["bk"])
    vh = head_projection(v.reshape(M, D), pp["wv"], pp["bv"])

    # Dim-split reshapes only (no transpose, no extra HBM pass).
    attn = flash_attention(qh.reshape(n_head, B, L, dt),
                           kh.reshape(n_head, B, L, dt),
                           vh.reshape(n_head, B, L, dt))        # [H, B, L, dt]

    out = output_projection(attn.reshape(n_head, M, dt), pp["wc"], pp["bc"])
    return out.reshape(B, L, D)


# ------------------------------------------------------ reference (plain) ---
def _reference(q, k, v, params, n_head):
    B, L, D = q.shape
    dt = D // n_head

    def lin(x, w, b):
        return x @ w.T + b

    def split(t):
        return t.reshape(B, L, n_head, dt).transpose(0, 2, 1, 3)

    qh = split(lin(q, params["wq"], params["bq"]))
    kh = split(lin(k, params["wk"], params["bk"]))
    vh = split(lin(v, params["wv"], params["bv"]))
    s = jnp.einsum("bhqd,bhkd->bhqk", qh, kh) / math.sqrt(dt)
    p = jax.nn.softmax(s, axis=-1)
    o = jnp.einsum("bhqk,bhkd->bhqd", p, vh)
    o = o.transpose(0, 2, 1, 3).reshape(B, L, D)
    return lin(o, params["wc"], params["bc"])


if __name__ == "__main__":
    B, L, d_model, n_head = 2, 8, 32, 4

    key = jax.random.PRNGKey(0)
    ks = jax.random.split(key, 11)

    def init_linear(kw, kb, d_in, d_out):
        bound = 1.0 / math.sqrt(d_in)   # PyTorch nn.Linear default init range
        w = jax.random.uniform(kw, (d_out, d_in), jnp.float32, -bound, bound)
        b = jax.random.uniform(kb, (d_out,), jnp.float32, -bound, bound)
        return w, b

    wq, bq = init_linear(ks[0], ks[1], d_model, d_model)
    wk, bk = init_linear(ks[2], ks[3], d_model, d_model)
    wv, bv = init_linear(ks[4], ks[5], d_model, d_model)
    wc, bc = init_linear(ks[6], ks[7], d_model, d_model)
    params = dict(wq=wq, bq=bq, wk=wk, bk=bk, wv=wv, bv=bv, wc=wc, bc=bc)

    q = jax.random.normal(ks[8], (B, L, d_model), jnp.float32)
    k = jax.random.normal(ks[9], (B, L, d_model), jnp.float32)
    v = jax.random.normal(ks[10], (B, L, d_model), jnp.float32)

    out = multi_head_attention(q, k, v, params, n_head)
    out = jax.block_until_ready(out)

    ref = _reference(q, k, v, params, n_head)
    assert out.shape == (B, L, d_model)
    # Tolerance accounts for the EUP approximate reciprocal in the softmax
    # normalization (pl.reciprocal(approx=True)); everything else is f32.
    assert jnp.allclose(out, ref, atol=2e-3, rtol=2e-3), \
        f"max err {jnp.max(jnp.abs(out - ref))}"

    print("KERNEL_OK")
</pallas_src>

<mosaic_0001>
module attributes {stable_mosaic.version = 11 : i64} {
  func.func @_head_proj_kernel(%arg0: i32, %arg1: i32, %arg2: i32, %arg3: memref<16x32xf32, #tpu.memory_space<vmem>>, %arg4: memref<1x32x8xf32, #tpu.memory_space<vmem>>, %arg5: memref<1x1x8xf32, #tpu.memory_space<vmem>>, %arg6: memref<1x16x8xf32, #tpu.memory_space<vmem>>, %arg7: memref<16x8xf32, #tpu.memory_space<vmem>>) attributes {dimension_semantics = [#tpu.dimension_semantics<parallel>, #tpu.dimension_semantics<parallel>, #tpu.dimension_semantics<arbitrary>], iteration_bounds = array<i64: 4, 1, 1>, scalar_prefetch = 0 : i64, scratch_operands = 1 : i64, tpu.core_type = #tpu.core_type<tc>, window_params = [{transform_indices = @transform_0, window_bounds = array<i64: 16, 32>}, {transform_indices = @transform_1, window_bounds = array<i64: 1, 32, 8>}, {transform_indices = @transform_2, window_bounds = array<i64: 1, 1, 8>}, {transform_indices = @transform_3, window_bounds = array<i64: 1, 16, 8>}]} {
    %c0_i32 = arith.constant 0 : i32
    %0 = arith.cmpi eq, %arg2, %c0_i32 : i32
    %1 = arith.extui %0 : i1 to i32
    %c0_i32_0 = arith.constant 0 : i32
    %2 = arith.cmpi ne, %1, %c0_i32_0 : i32
    scf.if %2 {
      %cst_11 = arith.constant 0.000000e+00 : f32
      %13 = vector.broadcast %cst_11 : f32 to vector<16x8xf32>
      %c0_12 = arith.constant 0 : index
      %c0_13 = arith.constant 0 : index
      %14 = vector.load %arg7[%c0_12, %c0_13] : memref<16x8xf32, #tpu.memory_space<vmem>>, vector<16x8xf32>
      tpu.vector_store %arg7[%c0_12, %c0_13], %13 {strides = array<i32>} : memref<16x8xf32, #tpu.memory_space<vmem>>, vector<16x8xf32>,
    } else {
    }
    %c0 = arith.constant 0 : index
    %c0_1 = arith.constant 0 : index
    %3 = vector.load %arg7[%c0, %c0_1] : memref<16x8xf32, #tpu.memory_space<vmem>>, vector<16x8xf32>
    %c0_2 = arith.constant 0 : index
    %c0_3 = arith.constant 0 : index
    %4 = vector.load %arg3[%c0_2, %c0_3] : memref<16x32xf32, #tpu.memory_space<vmem>>, vector<16x32xf32>
    %c0_4 = arith.constant 0 : index
    %c0_5 = arith.constant 0 : index
    %c0_6 = arith.constant 0 : index
    %5 = vector.load %arg4[%c0_4, %c0_5, %c0_6] : memref<1x32x8xf32, #tpu.memory_space<vmem>>, vector<1x32x8xf32>
    %6 = vector.shape_cast %5 : vector<1x32x8xf32> to vector<32x8xf32>
    %cst = arith.constant dense<0.000000e+00> : vector<16x8xf32>
    %7 = tpu.matmul %4, %6, %cst {dimension_numbers = #tpu.dot_dimension_numbers<[1], [0], [0], [1], [0, 0, 1, 1], [], []>} : vector<16x32xf32>, vector<32x8xf32>, vector<16x8xf32> -> vector<16x8xf32>
    %8 = arith.addf %3, %7 : vector<16x8xf32>
    %c0_7 = arith.constant 0 : index
    %c0_8 = arith.constant 0 : index
    %9 = vector.load %arg7[%c0_7, %c0_8] : memref<16x8xf32, #tpu.memory_space<vmem>>, vector<16x8xf32>
    tpu.vector_store %arg7[%c0_7, %c0_8], %8 {strides = array<i32>} : memref<16x8xf32, #tpu.memory_space<vmem>>, vector<16x8xf32>,
    %c0_i32_9 = arith.constant 0 : i32
    %10 = arith.cmpi eq, %arg2, %c0_i32_9 : i32
    %11 = arith.extui %10 : i1 to i32
    %c0_i32_10 = arith.constant 0 : i32
    %12 = arith.cmpi ne, %11, %c0_i32_10 : i32
    scf.if %12 {
      %c0_11 = arith.constant 0 : index
      %c0_12 = arith.constant 0 : index
      %13 = vector.load %arg7[%c0_11, %c0_12] : memref<16x8xf32, #tpu.memory_space<vmem>>, vector<16x8xf32>
      %c0_13 = arith.constant 0 : index
      %c0_14 = arith.constant 0 : index
      %c0_15 = arith.constant 0 : index
      %14 = vector.load %arg5[%c0_13, %c0_14, %c0_15] : memref<1x1x8xf32, #tpu.memory_space<vmem>>, vector<1x1x8xf32>
      %15 = vector.shape_cast %14 : vector<1x1x8xf32> to vector<1x8xf32>
      %16 = vector.broadcast %15 : vector<1x8xf32> to vector<16x8xf32>
      %17 = arith.addf %13, %16 : vector<16x8xf32>
      %c0_16 = arith.constant 0 : index
      %c0_17 = arith.constant 0 : index
      %c0_18 = arith.constant 0 : index
      %18 = vector.load %arg6[%c0_16, %c0_17, %c0_18] : memref<1x16x8xf32, #tpu.memory_space<vmem>>, vector<1x16x8xf32>
      %19 = vector.shape_cast %18 : vector<1x16x8xf32> to vector<16x8xf32>
      %20 = vector.shape_cast %17 : vector<16x8xf32> to vector<1x16x8xf32>
      tpu.vector_store %arg6[%c0_16, %c0_17, %c0_18], %20 {strides = array<i32>} : memref<1x16x8xf32, #tpu.memory_space<vmem>>, vector<1x16x8xf32>,
    } else {
    }
    return
  }
  func.func @transform_0(%arg0: i32, %arg1: i32, %arg2: i32) -> (i32, i32) {
    %c0_i32 = arith.constant 0 : i32
    return %arg1, %arg2 : i32, i32
  }
  func.func @transform_1(%arg0: i32, %arg1: i32, %arg2: i32) -> (i32, i32, i32) {
    %c0_i32 = arith.constant 0 : i32
    %c0_i32_0 = arith.constant 0 : i32
    return %arg0, %arg2, %c0_i32 : i32, i32, i32
  }
  func.func @transform_2(%arg0: i32, %arg1: i32, %arg2: i32) -> (i32, i32, i32) {
    %c0_i32 = arith.constant 0 : i32
    %c0_i32_0 = arith.constant 0 : i32
    %c0_i32_1 = arith.constant 0 : i32
    return %arg0, %c0_i32, %c0_i32_0 : i32, i32, i32
  }
  func.func @transform_3(%arg0: i32, %arg1: i32, %arg2: i32) -> (i32, i32, i32) {
    %c0_i32 = arith.constant 0 : i32
    %c0_i32_0 = arith.constant 0 : i32
    return %arg0, %arg1, %c0_i32 : i32, i32, i32
  }
}

</mosaic_0001>

<llo_original>
// kernel: tpu_custom_call.1
$region0: #{tpu_custom_call.1}
  #allocation0 [shape = 'u32[]', space=smem, size = 0x4, offset = 0x4, fixed_abs, tag = 'smem constant byte address 0x4 - core index']
  #allocation1 [shape = 'u32[72,128]{1,0:T(1,128)}', space=vmem, size = 0x9000, scoped, tag = 'internal scratch']
  #allocation2 [shape = 'f32[16,8]{1,0:T(8,128)}', space=vmem, size = 0x2000, scoped, tag = 'scratch operand']
  %s0 = inlined_call_operand.vmem [shape: f32[16,32], index: 0, kind: input, shape index: {}]
  %s1 = inlined_call_operand.vmem [shape: f32[4,32,8], index: 1, kind: input, shape index: {}]
  %s2 = inlined_call_operand.vmem [shape: f32[4,1,8], index: 2, kind: input, shape index: {}]
  %s3 = inlined_call_operand.vmem [shape: f32[4,16,8], index: 3, kind: output, shape index: {}]
  %s4 = sld [smem:[#allocation0]]
  $region53: #{tpu_custom_call.1} parent=0
    _
  %s6 = ssub.s32 1, %s4
  %s7 = scalar_select 0, %s6, %s4
  loop: start=0, step=1, limit=6
  $region2: #{tpu_custom_call.1} parent=0 // loop_pre_header
    _
  $region3: #{tpu_custom_call.1} parent=0 // loop_header
    %s9 = sphi 0, %s13
    %p10 = scmp.ge.s32.totalorder %s9, 6
    %s16 = sphi 0, %s35
    %s17 = sphi 0, %s31
    %s18 = sphi 0, %s27
    %s19 = sphi 0, %s16
    %s20 = sphi 0, %s17
    %s21 = sphi 0, %s18
    %s22 = sphi 0, %s19
    %s23 = sphi 0, %s20
    %s24 = sphi 0, %s21
    %s40 = sphi 0, %s42
    %s43 = sphi 0, %s40
    %s44 = sphi 0, %s43
    %s60 = sphi 0, %s44
    %s68 = sphi 0, %s70
    %s71 = sphi 0, %s68
    %s72 = sphi 0, %s71
    %s88 = sphi 0, %s72
    %s94 = sphi 0, %s96
    %s97 = sphi 0, %s94
    %s98 = sphi 0, %s97
    %s114 = sphi 0, %s98
    %s122 = sphi 0, %s124
    %s125 = sphi 0, %s122
    %s126 = sphi 0, %s125
    %s142 = sphi 0, %s126
  $region4: #{tpu_custom_call.1} parent=0 // loop_header_branch
    %12 = sbr.rel (%p10) target = $region8
  $region5: #{tpu_custom_call.1} parent=0 // loop_body
    %s14 = ssub.s32 %s9, 1
    %s15 = ssub.s32 %s9, 2
    %s25 = sadd.s32 1, %s18
    %p26 = scmp.ge.s32.totalorder %s25, 1
    %s27 = scalar_select %p26, 0, %s25
    %s28 = sadd.s32 1, %s17
    %s29 = scalar_select %p26, %s28, %s17
    %p30 = scmp.ge.s32.totalorder %s29, 1
    %s31 = scalar_select %p30, 0, %s29
    %s32 = sadd.s32 1, %s16
    %s33 = scalar_select %p30, %s32, %s16
    %p34 = scmp.ge.s32.totalorder %s33, 4
    %s35 = scalar_select %p34, 0, %s33
    %s36 = ssub.s32 %s17, %s31
    %s37 = ssub.s32 %s18, %s27
    %s38 = sor.u32 %s36, %s37
    %p39 = scmp.eq.s32.totalorder %s38, 0
    %s41 = sadd.s32 %s40, 1
    %s42 = scalar_select %p39, %s40, %s41
    %p45 = pneg %p39
    %p46 = scmp.eq.s32.totalorder %s9, 3
    %p47 = por %p45, %p46
    %p48 = scmp.ne.s32.totalorder %s40, %s43
    %p49 = scmp.eq.s32.totalorder %s9, 0
    %p50 = por %p48, %p49
    %p51 = scmp.ne.s32.totalorder %s40, %s43
    %p52 = scmp.eq.s32.totalorder %s14, 3
    %p53 = por %p51, %p52
    %p54 = scmp.ne.s32.totalorder %s43, %s44
    %p55 = scmp.eq.s32.totalorder %s14, 0
    %p56 = por %p54, %p55
    %p57 = scmp.ne.s32.totalorder %s43, %s44
    %p58 = scmp.eq.s32.totalorder %s15, 3
    %p59 = por %p57, %p58
    %p61 = scmp.ne.s32.totalorder %s44, %s60
    %p62 = scmp.eq.s32.totalorder %s15, 0
    %p63 = por %p61, %p62
    %s64 = ssub.s32 %s16, %s35
    %s65 = ssub.s32 %s18, %s27
    %s66 = sor.u32 %s64, %s65
    %p67 = scmp.eq.s32.totalorder %s66, 0
    %s69 = sadd.s32 %s68, 1
    %s70 = scalar_select %p67, %s68, %s69
    %p73 = pneg %p67
    %p74 = scmp.eq.s32.totalorder %s9, 3
    %p75 = por %p73, %p74
    %p76 = scmp.ne.s32.totalorder %s68, %s71
    %p77 = scmp.eq.s32.totalorder %s9, 0
    %p78 = por %p76, %p77
    %p79 = scmp.ne.s32.totalorder %s68, %s71
    %p80 = scmp.eq.s32.totalorder %s14, 3
    %p81 = por %p79, %p80
    %p82 = scmp.ne.s32.totalorder %s71, %s72
    %p83 = scmp.eq.s32.totalorder %s14, 0
    %p84 = por %p82, %p83
    %p85 = scmp.ne.s32.totalorder %s71, %s72
    %p86 = scmp.eq.s32.totalorder %s15, 3
    %p87 = por %p85, %p86
    %p89 = scmp.ne.s32.totalorder %s72, %s88
    %p90 = scmp.eq.s32.totalorder %s15, 0
    %p91 = por %p89, %p90
    %s92 = ssub.s32 %s16, %s35
    %p93 = scmp.eq.s32.totalorder %s92, 0
    %s95 = sadd.s32 %s94, 1
    %s96 = scalar_select %p93, %s94, %s95
    %p99 = pneg %p93
    %p100 = scmp.eq.s32.totalorder %s9, 3
    %p101 = por %p99, %p100
    %p102 = scmp.ne.s32.totalorder %s94, %s97
    %p103 = scmp.eq.s32.totalorder %s9, 0
    %p104 = por %p102, %p103
    %p105 = scmp.ne.s32.totalorder %s94, %s97
    %p106 = scmp.eq.s32.totalorder %s14, 3
    %p107 = por %p105, %p106
    %p108 = scmp.ne.s32.totalorder %s97, %s98
    %p109 = scmp.eq.s32.totalorder %s14, 0
    %p110 = por %p108, %p109
    %p111 = scmp.ne.s32.totalorder %s97, %s98
    %p112 = scmp.eq.s32.totalorder %s15, 3
    %p113 = por %p111, %p112
    %p115 = scmp.ne.s32.totalorder %s98, %s114
    %p116 = scmp.eq.s32.totalorder %s15, 0
    %p117 = por %p115, %p116
    %s118 = ssub.s32 %s16, %s35
    %s119 = ssub.s32 %s17, %s31
    %s120 = sor.u32 %s118, %s119
    %p121 = scmp.eq.s32.totalorder %s120, 0
    %s123 = sadd.s32 %s122, 1
    %s124 = scalar_select %p121, %s122, %s123
    %p127 = pneg %p121
    %p128 = scmp.eq.s32.totalorder %s9, 3
    %p129 = por %p127, %p128
    %p130 = scmp.ne.s32.totalorder %s122, %s125
    %p131 = scmp.eq.s32.totalorder %s9, 0
    %p132 = por %p130, %p131
    %p133 = scmp.ne.s32.totalorder %s122, %s125
    %p134 = scmp.eq.s32.totalorder %s14, 3
    %p135 = por %p133, %p134
    %p136 = scmp.ne.s32.totalorder %s125, %s126
    %p137 = scmp.eq.s32.totalorder %s14, 0
    %p138 = por %p136, %p137
    %p139 = scmp.ne.s32.totalorder %s125, %s126
    %p140 = scmp.eq.s32.totalorder %s15, 3
    %p141 = por %p139, %p140
    %p143 = scmp.ne.s32.totalorder %s126, %s142
    %p144 = scmp.eq.s32.totalorder %s15, 0
    %p145 = por %p143, %p144
    %p146 = scmp.le.s32.totalorder 1, %s9
    %p147 = scmp.lt.s32.totalorder %s9, 5
    %p148 = pnand %p146, %p147
    %p149 = pneg %p148
    // Predicated region
    $region9: #{tpu_custom_call.1} parent=5 // pred_check
      _
    $region10: #{tpu_custom_call.1} parent=5 // pred_check_branch
      %151 = sbr.rel (%p148) target = $region12
    $region11: #{tpu_custom_call.1} parent=5 // pred_region
      %s152 = ssub.s32 %s9, 1
      // Predicated region
      $region13: #{tpu_custom_call.1} parent=11 // pred_check
        %p153 = pneg %p56
      $region14: #{tpu_custom_call.1} parent=11 // pred_check_branch
        %155 = sbr.rel (%p153) target = $region16
      $region15: #{tpu_custom_call.1} parent=11 // pred_region
        %s156 = smul.u32 2, %s20
        %p157 = scmp.lt.s32.totalorder %s156, 1
        %s158 = scalar_select %p157, %s156, 1
        %p159 = scmp.lt.s32.totalorder %s21, 0
        %s160 = scalar_select %p159, %s21, 0
        %s161 = sadd.s32 %s160, %s158
        %s162 = smul.addr %s161, 8
        %s163 = scalar_lea.vmem %s0, %s162
        %s164 = smul.u32 2, %s20
      $region16: #{tpu_custom_call.1} parent=11 // pred_fallthru
        _
    $region12: #{tpu_custom_call.1} parent=5 // pred_fallthru
      _
    %p165 = scmp.lt.s32.totalorder %s9, 4
    // Predicated region
    $region17: #{tpu_custom_call.1} parent=5 // pred_check
      %p166 = pneg %p165
    $region18: #{tpu_custom_call.1} parent=5 // pred_check_branch
      %168 = sbr.rel (%p166) target = $region20
    $region19: #{tpu_custom_call.1} parent=5 // pred_region
      // Predicated region
      $region21: #{tpu_custom_call.1} parent=19 // pred_check
        %p169 = pneg %p78
      $region22: #{tpu_custom_call.1} parent=19 // pred_check_branch
        %171 = sbr.rel (%p169) target = $region24
      $region23: #{tpu_custom_call.1} parent=19 // pred_region
        %s172 = smul.u32 4, %s18
        %p173 = scmp.lt.s32.totalorder %s16, 3
        %s174 = scalar_select %p173, %s16, 3
        %p175 = scmp.lt.s32.totalorder %s172, 3
        %s176 = scalar_select %p175, %s172, 3
        %s177 = smul.addr %s174, 4
        %s178 = sadd.s32 %s176, %s177
        %s179 = smul.addr %s178, 8
        %s180 = scalar_lea.vmem %s1, %s179
        %s181 = smul.u32 4, %s18
      $region24: #{tpu_custom_call.1} parent=19 // pred_fallthru
        _
      // Predicated region
      $region25: #{tpu_custom_call.1} parent=19 // pred_check
        %p182 = pneg %p104
      $region26: #{tpu_custom_call.1} parent=19 // pred_check_branch
        %184 = sbr.rel (%p182) target = $region28
      $region27: #{tpu_custom_call.1} parent=19 // pred_region
        %p185 = scmp.lt.s32.totalorder %s16, 3
        %s186 = scalar_select %p185, %s16, 3
        %s187 = scalar_lea.vmem %s2, %s186
      $region28: #{tpu_custom_call.1} parent=19 // pred_fallthru
        _
    $region20: #{tpu_custom_call.1} parent=5 // pred_fallthru
      _
    %p188 = scmp.le.s32.totalorder 1, %s9
    %p189 = scmp.lt.s32.totalorder %s9, 5
    %p190 = pnand %p188, %p189
    %p191 = pneg %p190
    // Predicated region
    $region29: #{tpu_custom_call.1} parent=5 // pred_check
      _
    $region30: #{tpu_custom_call.1} parent=5 // pred_check_branch
      %193 = sbr.rel (%p190) target = $region32
    $region31: #{tpu_custom_call.1} parent=5 // pred_region
      %s194 = ssub.s32 %s9, 1
      %s195 = smul.u32 2, %s20
      %p196 = scmp.lt.s32.totalorder %s195, 1
      %s197 = scalar_select %p196, %s195, 1
      %p198 = scmp.lt.s32.totalorder %s21, 0
      %s199 = scalar_select %p198, %s21, 0
      %s200 = sadd.s32 %s199, %s197
      %s201 = smul.addr %s200, 8
      %s202 = scalar_lea.vmem %s0, %s201
      %p203 = pneg %p56
      %p204 = pneg %p53
      %s205 = smul.u32 4, %s21
      %p206 = scmp.lt.s32.totalorder %s19, 3
      %s207 = scalar_select %p206, %s19, 3
      %p208 = scmp.lt.s32.totalorder %s205, 3
      %s209 = scalar_select %p208, %s205, 3
      %s210 = smul.addr %s207, 4
      %s211 = sadd.s32 %s209, %s210
      %s212 = smul.addr %s211, 8
      %s213 = scalar_lea.vmem %s1, %s212
      %p214 = pneg %p84
      %p215 = pneg %p81
      %p216 = scmp.lt.s32.totalorder %s19, 3
      %s217 = scalar_select %p216, %s19, 3
      %s218 = scalar_lea.vmem %s2, %s217
      %p219 = pneg %p110
      %p220 = pneg %p107
      %p221 = pneg %p138
      %p222 = pneg %p135
      %s223 = smul.u32 2, %s20
      %p224 = scmp.lt.s32.totalorder %s19, 3
      %s225 = scalar_select %p224, %s19, 3
      %p226 = scmp.lt.s32.totalorder %s223, 1
      %s227 = scalar_select %p226, %s223, 1
      %s228 = smul.addr %s225, 2
      %s229 = sadd.s32 %s227, %s228
      %s230 = smul.addr %s229, 8
      %s231 = scalar_lea.vmem %s3, %s230
      %s232 = smul.u32 2, %s20
      %p233 = scmp.lt.s32.totalorder %s232, 1
      %s234 = scalar_select %p233, %s232, 1
      %p235 = scmp.lt.s32.totalorder %s21, 0
      %s236 = scalar_select %p235, %s21, 0
      %s237 = sadd.s32 %s236, %s234
      %s238 = smul.addr %s237, 8
      %s239 = scalar_lea.vmem %s0, %s238
      %s240 = smul.u32 2, %s20
      %s241 = smul.u32 4, %s21
      %p242 = scmp.lt.s32.totalorder %s19, 3
      %s243 = scalar_select %p242, %s19, 3
      %p244 = scmp.lt.s32.totalorder %s241, 3
      %s245 = scalar_select %p244, %s241, 3
      %s246 = smul.addr %s243, 4
      %s247 = sadd.s32 %s245, %s246
      %s248 = smul.addr %s247, 8
      %s249 = scalar_lea.vmem %s1, %s248
      %s250 = smul.u32 4, %s21
      %p251 = scmp.lt.s32.totalorder %s19, 3
      %s252 = scalar_select %p251, %s19, 3
      %s253 = scalar_lea.vmem %s2, %s252
      %s254 = smul.u32 2, %s20
      %p255 = scmp.lt.s32.totalorder %s19, 3
      %s256 = scalar_select %p255, %s19, 3
      %p257 = scmp.lt.s32.totalorder %s254, 1
      %s258 = scalar_select %p257, %s254, 1
      %s259 = smul.addr %s256, 2
      %s260 = sadd.s32 %s258, %s259
      %s261 = smul.addr %s260, 8
      %s262 = scalar_lea.vmem %s3, %s261
      %s263 = smul.u32 2, %s20
      %p264 = scmp.eq.s32.totalorder %s21, 0
      // Predicated region
      $region33: #{tpu_custom_call.1} parent=31 // pred_check
        %p265 = pneg %p264
      $region34: #{tpu_custom_call.1} parent=31 // pred_check_branch
        %267 = sbr.rel (%p265) target = $region36
      $region35: #{tpu_custom_call.1} parent=31 // pred_region
        %vm268 = vcmask 64512
        %269 = vst.msk [vmem:[#allocation2] sm:$0xff] %vm268, 0.0
        %270 = vst.msk [vmem:[#allocation2 + $0x8] sm:$0xff] %vm268, 0.0
      $region36: #{tpu_custom_call.1} parent=31 // pred_fallthru
        _
      %v271 = vld [vmem:[#allocation2] sm:$0xff]
      %v272 = vld [vmem:[#allocation2 + $0x8] sm:$0xff]
      %v273 = vld [vmem:[%s239] sm:$0xff]
      %v274 = vld [vmem:[%s239 + $0x8] sm:$0xff]
      %v275 = vld [vmem:[%s249] sm:$0xff]
      %v276 = vld [vmem:[%s249 + $0x8] sm:$0xff]
      %v277 = vld [vmem:[%s249 + $0x10] sm:$0xff]
      %v278 = vld [vmem:[%s249 + $0x18] sm:$0xff]
      %vm279 = vcmask 261120
      %v281 = vsel %vm279, %v273, 0
      %v284 = vsel %vm279, %v274, 0
      %286 = vmatpush.msra.mxu0 0.0
      %287 = vmatpush.msra.mxu0 0.0
      %288 = vmatpush.msra.mxu0 0.0
      %289 = vmatpush.msra.mxu0 0.0
      %290 = vmatpush.msra.mxu0 0.0
      %291 = vmatpush.msra.mxu0 0.0
      %292 = vmatpush.msra.mxu0 0.0
      %293 = vmatpush.msra.mxu0 0.0
      %294 = vmatpush.msra.mxu0 0.0
      %295 = vmatpush.msra.mxu0 0.0
      %296 = vmatpush.msra.mxu0 0.0
      %297 = vmatpush.msra.mxu0 0.0
      %298 = vmatpush.msra.mxu0 %v278
      %299 = vmatpush.msra.mxu0 %v277
      %300 = vmatpush.msra.mxu0 %v276
      %301 = vmatpush.msra.mxu0 %v275
      %302 = vmatmul.f32.gmra.mxu0 %v281
      %v303 = vpop.f32.mrf.mxu0
      %v304 = vadd.f32 0.0, %v303
      %305 = vmatmul.f32.gmra.mxu0 %v284
      %v306 = vpop.f32.mrf.mxu0
      %v307 = vadd.f32 0.0, %v306
      %308 = vdwg.mxu0
      %v309 = vadd.f32 %v271, %v304
      %v310 = vadd.f32 %v272, %v307
      %vm311 = vcmask 64512
      %312 = vst.msk [vmem:[#allocation2] sm:$0xff] %vm311, %v309
      %313 = vst.msk [vmem:[#allocation2 + $0x8] sm:$0xff] %vm311, %v310
      // Predicated region
      $region37: #{tpu_custom_call.1} parent=31 // pred_check
        %p314 = pneg %p264
      $region38: #{tpu_custom_call.1} parent=31 // pred_check_branch
        %316 = sbr.rel (%p314) target = $region40
      $region39: #{tpu_custom_call.1} parent=31 // pred_region
        %v317 = vld [vmem:[#allocation2] sm:$0xff]
        %v318 = vld [vmem:[#allocation2 + $0x8] sm:$0xff]
        %v319 = vld [vmem:[%s253] sm:$0x1]
        %v321 = vperm.slane %v319, 0
        %v323 = vadd.f32 %v317, %v321
        %v324 = vadd.f32 %v318, %v321
        %325 = vst.msk [vmem:[%s262] sm:$0xff] %vm311, %v323
        %326 = vst.msk [vmem:[%s262 + $0x8] sm:$0xff] %vm311, %v324
      $region40: #{tpu_custom_call.1} parent=31 // pred_fallthru
        _
      %s327 = smul.u32 2, %s20
      %p328 = scmp.lt.s32.totalorder %s19, 3
      %s329 = scalar_select %p328, %s19, 3
      %p330 = scmp.lt.s32.totalorder %s327, 1
      %s331 = scalar_select %p330, %s327, 1
      %s332 = smul.addr %s329, 2
      %s333 = sadd.s32 %s331, %s332
      %s334 = smul.addr %s333, 8
      %s335 = scalar_lea.vmem %s3, %s334
      // Predicated region
      $region41: #{tpu_custom_call.1} parent=31 // pred_check
        %p336 = pneg %p135
      $region42: #{tpu_custom_call.1} parent=31 // pred_check_branch
        %338 = sbr.rel (%p336) target = $region44
      $region43: #{tpu_custom_call.1} parent=31 // pred_region
        %s339 = smul.u32 2, %s20
      $region44: #{tpu_custom_call.1} parent=31 // pred_fallthru
        _
    $region32: #{tpu_custom_call.1} parent=5 // pred_fallthru
      _
    %p340 = scmp.le.s32.totalorder 2, %s9
    // Predicated region
    $region45: #{tpu_custom_call.1} parent=5 // pred_check
      %p341 = pneg %p340
    $region46: #{tpu_custom_call.1} parent=5 // pred_check_branch
      %343 = sbr.rel (%p341) target = $region48
    $region47: #{tpu_custom_call.1} parent=5 // pred_region
      %s344 = ssub.s32 %s9, 2
      // Predicated region
      $region49: #{tpu_custom_call.1} parent=47 // pred_check
        %p345 = pneg %p141
      $region50: #{tpu_custom_call.1} parent=47 // pred_check_branch
        %347 = sbr.rel (%p345) target = $region52
      $region51: #{tpu_custom_call.1} parent=47 // pred_region
        %s348 = smul.u32 2, %s23
        %p349 = scmp.lt.s32.totalorder %s22, 3
        %s350 = scalar_select %p349, %s22, 3
        %p351 = scmp.lt.s32.totalorder %s348, 1
        %s352 = scalar_select %p351, %s348, 1
        %s353 = smul.addr %s350, 2
        %s354 = sadd.s32 %s352, %s353
        %s355 = smul.addr %s354, 8
        %s356 = scalar_lea.vmem %s3, %s355
      $region52: #{tpu_custom_call.1} parent=47 // pred_fallthru
        _
    $region48: #{tpu_custom_call.1} parent=5 // pred_fallthru
      _
  $region6: #{tpu_custom_call.1} parent=0 // loop_footer
    %s13 = sadd.s32 1, %s9
  $region7: #{tpu_custom_call.1} parent=0 // loop_footer_branch
    %8 = sbr.rel target = $region3
  $region8: #{tpu_custom_call.1} parent=0 // loop_exit
    _

</llo_original>
